<compile_context>
chip_gen: v6e
topology: v6e:2x2x1
jax: 0.10.0
libtpu: 0.0.40
codegen_flags: <defaults>
</compile_context>

<pallas_src>
import jax
import jax.numpy as jnp
from jax import lax
from jax.experimental import pallas as pl
from jax.experimental.pallas import tpu as pltpu


def _round_up(x, m):
    return ((x + m - 1) // m) * m


def critic_kernel(x_ref, w1_ref, b1_ref, w2_ref, b2_ref, w3_ref, b3_ref, o_ref):
    # x_ref: (TB, D).  Compute h1^T = W1 @ x^T -> (H, TB); batch is on lanes
    # from here on, so the output row is lane-dense with no relayout needed.
    h1t = lax.dot_general(
        w1_ref[...], x_ref[...],
        dimension_numbers=(((1,), (1,)), ((), ())),
        preferred_element_type=jnp.float32,
    )
    h1t = jnp.maximum(h1t + b1_ref[...], 0.0)          # f32 epilogue (v5e-safe)

    # h2^T = W2 @ h1^T -> (H, TB); cast activation to the weight compute dtype
    # (no-op for f32, enables the bf16 MXU path for v6e/v7x).
    h2t = jnp.dot(w2_ref[...], h1t.astype(w2_ref.dtype),
                  preferred_element_type=jnp.float32)
    h2t = jnp.maximum(h2t + b2_ref[...], 0.0)

    # Value head: (H, TB) * (H, 1) on the VPU + sublane reduction on the XLU
    # -> (1, TB) lane-dense row.  b3 is a scalar read from SMEM.
    v = jnp.sum(h2t * w3_ref[...], axis=0, keepdims=True) + b3_ref[0]
    o_ref[...] = v.astype(o_ref.dtype)


def critic_forward(state, params, *, block_b=1024):
    """state: (B, input_dim); params as produced by init_params().

    Returns value of shape (B, 1), float32.
    """
    B, D = state.shape
    H = params["w1"].shape[0]
    compute_dtype = params["w1"].dtype

    # Batch tile: multiple of 128 so each output tile is a full-lane-width row.
    TB = _round_up(min(block_b, _round_up(B, 128)), 128)
    B_pad = _round_up(B, TB)
    G = B_pad // TB

    x = state.astype(compute_dtype)
    if B_pad != B:
        x = jnp.pad(x, ((0, B_pad - B), (0, 0)))

    w1, b1 = params["w1"], params["b1"]
    w2, b2 = params["w2"], params["b2"]
    w3, b3 = params["w3"], params["b3"]

    flops = 2 * B_pad * (D * H + H * H + H)
    bytes_accessed = int(
        x.size * x.dtype.itemsize
        + sum(int(p.size) * p.dtype.itemsize for p in (w1, b1, w2, b2, w3, b3))
        + B_pad * 4
    )

    out_row = pl.pallas_call(
        critic_kernel,
        out_shape=jax.ShapeDtypeStruct((1, B_pad), jnp.float32),
        grid_spec=pltpu.PrefetchScalarGridSpec(
            num_scalar_prefetch=0,
            grid=(G,),
            in_specs=[
                pl.BlockSpec((TB, D), lambda i: (i, 0)),        # activations stream
                pl.BlockSpec(w1.shape, lambda i: (0, 0)),       # weights stay resident
                pl.BlockSpec(b1.shape, lambda i: (0, 0)),
                pl.BlockSpec(w2.shape, lambda i: (0, 0)),
                pl.BlockSpec(b2.shape, lambda i: (0, 0)),
                pl.BlockSpec(w3.shape, lambda i: (0, 0)),
                pl.BlockSpec(memory_space=pltpu.MemorySpace.SMEM),  # b3 scalar
            ],
            out_specs=pl.BlockSpec((1, TB), lambda i: (0, i)),  # lane-dense output
        ),
        compiler_params=pltpu.CompilerParams(
            dimension_semantics=("parallel",),                  # v7x: 2 TCs share batch
        ),
        cost_estimate=pl.CostEstimate(
            flops=flops, transcendentals=0, bytes_accessed=bytes_accessed),
    )(x, w1, b1, w2, b2, w3, b3)

    return out_row[0, :B][:, None]


def init_params(key, input_dim, hidden_dim=64):
    """Orthogonal init (gain=1) like nn.init.orthogonal_, zero biases.

    Weights kept in PyTorch (out, in) layout (the kernel contracts the `in`
    dim of both operands). Biases stored as (H, 1) columns so they broadcast
    over lanes; value-head weight stored as a (H, 1) column for the VPU.
    """
    k1, k2, k3 = jax.random.split(key, 3)
    ortho = jax.nn.initializers.orthogonal(scale=1.0)
    w1 = ortho(k1, (hidden_dim, input_dim), jnp.float32)   # (out, in)
    w2 = ortho(k2, (hidden_dim, hidden_dim), jnp.float32)
    w3 = ortho(k3, (1, hidden_dim), jnp.float32)
    return {
        "w1": w1,                                       # (H, D)   MXU operand
        "b1": jnp.zeros((hidden_dim, 1), jnp.float32),  # (H, 1)
        "w2": w2,                                       # (H, H)   MXU operand
        "b2": jnp.zeros((hidden_dim, 1), jnp.float32),
        "w3": w3.T,                                     # (H, 1)   VPU operand (f32)
        "b3": jnp.zeros((1,), jnp.float32),             # scalar via SMEM
    }


def with_compute_dtype(params, dtype):
    """Cast only the MXU operands (streamed/state-shaped traffic) to `dtype`."""
    p = dict(params)
    p["w1"] = p["w1"].astype(dtype)
    p["w2"] = p["w2"].astype(dtype)
    return p


def critic_forward_ref(state, params):
    """Pure-JAX reference matching the PyTorch forward exactly (f32)."""
    dot = lambda a, b: jnp.dot(a, b, precision=lax.Precision.HIGHEST)
    h1 = jax.nn.relu(dot(state, params["w1"].T) + params["b1"][:, 0])
    h2 = jax.nn.relu(dot(h1, params["w2"].T) + params["b2"][:, 0])
    return dot(h2, params["w3"]) + params["b3"]


if __name__ == "__main__":
    key = jax.random.PRNGKey(0)
    k_param, k_state, k_state2 = jax.random.split(key, 3)

    input_dim, hidden_dim = 32, 64
    params = init_params(k_param, input_dim, hidden_dim)

    # Small demo batch (single tile).
    batch = 8
    state = jax.random.normal(k_state, (batch, input_dim), dtype=jnp.float32)
    value = jax.block_until_ready(critic_forward(state, params))
    value_ref = critic_forward_ref(state, params)
    assert value.shape == (batch, 1)
    assert jnp.allclose(value, value_ref, atol=1e-3, rtol=1e-3), float(
        jnp.max(jnp.abs(value - value_ref)))

    # Multi-tile path: batch not a multiple of the tile -> padding + 3 grid steps.
    batch2 = 300
    state2 = jax.random.normal(k_state2, (batch2, input_dim), dtype=jnp.float32)
    value2 = jax.block_until_ready(critic_forward(state2, params, block_b=128))
    value2_ref = critic_forward_ref(state2, params)
    assert value2.shape == (batch2, 1)
    assert jnp.allclose(value2, value2_ref, atol=1e-3, rtol=1e-3), float(
        jnp.max(jnp.abs(value2 - value2_ref)))

    # bf16 streaming path (v6e/v7x-oriented); epilogue stays f32 inside kernel.
    params_bf16 = with_compute_dtype(params, jnp.bfloat16)
    value_bf16 = jax.block_until_ready(
        critic_forward(state2.astype(jnp.bfloat16), params_bf16, block_b=128))
    assert value_bf16.shape == (batch2, 1)
    assert bool(jnp.all(jnp.isfinite(value_bf16)))
    assert jnp.allclose(value_bf16, value2_ref, atol=0.5)

    print("KERNEL_OK")
</pallas_src>

<mosaic_0001>
module attributes {stable_mosaic.version = 11 : i64} {
  func.func @critic_kernel(%arg0: i32, %arg1: memref<128x32xf32, #tpu.memory_space<vmem>>, %arg2: memref<64x32xf32, #tpu.memory_space<vmem>>, %arg3: memref<64x1xf32, #tpu.memory_space<vmem>>, %arg4: memref<64x64xf32, #tpu.memory_space<vmem>>, %arg5: memref<64x1xf32, #tpu.memory_space<vmem>>, %arg6: memref<64x1xf32, #tpu.memory_space<vmem>>, %arg7: memref<1xf32, #tpu.memory_space<smem>>, %arg8: memref<1x128xf32, #tpu.memory_space<vmem>>) attributes {dimension_semantics = [#tpu.dimension_semantics<parallel>], iteration_bounds = array<i64: 1>, scalar_prefetch = 0 : i64, scratch_operands = 0 : i64, tpu.core_type = #tpu.core_type<tc>, window_params = [{transform_indices = @transform_0, window_bounds = array<i64: 128, 32>}, {pipeline_mode = #tpu.pipeline_mode<synchronous>, transform_indices = @transform_1, window_bounds = array<i64: 64, 32>}, {pipeline_mode = #tpu.pipeline_mode<synchronous>, transform_indices = @transform_2, window_bounds = array<i64: 64, 1>}, {pipeline_mode = #tpu.pipeline_mode<synchronous>, transform_indices = @transform_3, window_bounds = array<i64: 64, 64>}, {pipeline_mode = #tpu.pipeline_mode<synchronous>, transform_indices = @transform_4, window_bounds = array<i64: 64, 1>}, {pipeline_mode = #tpu.pipeline_mode<synchronous>, transform_indices = @transform_5, window_bounds = array<i64: 64, 1>}, {transform_indices = @transform_6, window_bounds = array<i64: 1>}, {transform_indices = @transform_7, window_bounds = array<i64: 1, 128>}]} {
    %c0 = arith.constant 0 : index
    %c0_0 = arith.constant 0 : index
    %0 = vector.load %arg2[%c0, %c0_0] : memref<64x32xf32, #tpu.memory_space<vmem>>, vector<64x32xf32>
    %c0_1 = arith.constant 0 : index
    %c0_2 = arith.constant 0 : index
    %1 = vector.load %arg1[%c0_1, %c0_2] : memref<128x32xf32, #tpu.memory_space<vmem>>, vector<128x32xf32>
    %cst = arith.constant dense<0.000000e+00> : vector<64x128xf32>
    %2 = tpu.matmul %0, %1, %cst {dimension_numbers = #tpu.dot_dimension_numbers<[1], [1], [0], [0], [0, 0, 1, 0], [], []>} : vector<64x32xf32>, vector<128x32xf32>, vector<64x128xf32> -> vector<64x128xf32>
    %c0_3 = arith.constant 0 : index
    %c0_4 = arith.constant 0 : index
    %3 = vector.load %arg3[%c0_3, %c0_4] : memref<64x1xf32, #tpu.memory_space<vmem>>, vector<64x1xf32>
    %4 = vector.broadcast %3 : vector<64x1xf32> to vector<64x128xf32>
    %5 = arith.addf %2, %4 : vector<64x128xf32>
    %cst_5 = arith.constant 0.000000e+00 : f32
    %6 = vector.broadcast %cst_5 : f32 to vector<64x128xf32>
    %7 = arith.maximumf %5, %6 : vector<64x128xf32>
    %c0_6 = arith.constant 0 : index
    %c0_7 = arith.constant 0 : index
    %8 = vector.load %arg4[%c0_6, %c0_7] : memref<64x64xf32, #tpu.memory_space<vmem>>, vector<64x64xf32>
    %cst_8 = arith.constant dense<0.000000e+00> : vector<64x128xf32>
    %9 = tpu.matmul %8, %7, %cst_8 {dimension_numbers = #tpu.dot_dimension_numbers<[1], [0], [0], [1], [0, 0, 1, 1], [], []>} : vector<64x64xf32>, vector<64x128xf32>, vector<64x128xf32> -> vector<64x128xf32>
    %c0_9 = arith.constant 0 : index
    %c0_10 = arith.constant 0 : index
    %10 = vector.load %arg5[%c0_9, %c0_10] : memref<64x1xf32, #tpu.memory_space<vmem>>, vector<64x1xf32>
    %11 = vector.broadcast %10 : vector<64x1xf32> to vector<64x128xf32>
    %12 = arith.addf %9, %11 : vector<64x128xf32>
    %cst_11 = arith.constant 0.000000e+00 : f32
    %13 = vector.broadcast %cst_11 : f32 to vector<64x128xf32>
    %14 = arith.maximumf %12, %13 : vector<64x128xf32>
    %c0_12 = arith.constant 0 : index
    %c0_13 = arith.constant 0 : index
    %15 = vector.load %arg6[%c0_12, %c0_13] : memref<64x1xf32, #tpu.memory_space<vmem>>, vector<64x1xf32>
    %16 = vector.broadcast %15 : vector<64x1xf32> to vector<64x128xf32>
    %17 = arith.mulf %14, %16 : vector<64x128xf32>
    %cst_14 = arith.constant dense<0.000000e+00> : vector<128xf32>
    %18 = vector.multi_reduction <add>, %17, %cst_14 [0] : vector<64x128xf32> to vector<128xf32>
    %19 = vector.shape_cast %18 : vector<128xf32> to vector<1x128xf32>
    %c0_15 = arith.constant 0 : index
    %20 = memref.load %arg7[%c0_15] : memref<1xf32, #tpu.memory_space<smem>>
    %21 = vector.broadcast %20 : f32 to vector<1x128xf32>
    %22 = arith.addf %19, %21 : vector<1x128xf32>
    %c0_16 = arith.constant 0 : index
    %c0_17 = arith.constant 0 : index
    %23 = vector.load %arg8[%c0_16, %c0_17] : memref<1x128xf32, #tpu.memory_space<vmem>>, vector<1x128xf32>
    tpu.vector_store %arg8[%c0_16, %c0_17], %22 {strides = array<i32>} : memref<1x128xf32, #tpu.memory_space<vmem>>, vector<1x128xf32>,
    return
  }
  func.func @transform_0(%arg0: i32) -> (i32, i32) {
    %c0_i32 = arith.constant 0 : i32
    %c0_i32_0 = arith.constant 0 : i32
    return %arg0, %c0_i32 : i32, i32
  }
  func.func @transform_1(%arg0: i32) -> (i32, i32) {
    %c0_i32 = arith.constant 0 : i32
    %c0_i32_0 = arith.constant 0 : i32
    %c0_i32_1 = arith.constant 0 : i32
    return %c0_i32, %c0_i32_0 : i32, i32
  }
  func.func @transform_2(%arg0: i32) -> (i32, i32) {
    %c0_i32 = arith.constant 0 : i32
    %c0_i32_0 = arith.constant 0 : i32
    %c0_i32_1 = arith.constant 0 : i32
    return %c0_i32, %c0_i32_0 : i32, i32
  }
  func.func @transform_3(%arg0: i32) -> (i32, i32) {
    %c0_i32 = arith.constant 0 : i32
    %c0_i32_0 = arith.constant 0 : i32
    %c0_i32_1 = arith.constant 0 : i32
    return %c0_i32, %c0_i32_0 : i32, i32
  }
  func.func @transform_4(%arg0: i32) -> (i32, i32) {
    %c0_i32 = arith.constant 0 : i32
    %c0_i32_0 = arith.constant 0 : i32
    %c0_i32_1 = arith.constant 0 : i32
    return %c0_i32, %c0_i32_0 : i32, i32
  }
  func.func @transform_5(%arg0: i32) -> (i32, i32) {
    %c0_i32 = arith.constant 0 : i32
    %c0_i32_0 = arith.constant 0 : i32
    %c0_i32_1 = arith.constant 0 : i32
    return %c0_i32, %c0_i32_0 : i32, i32
  }
  func.func @transform_6(%arg0: i32) -> i32 {
    %c0_i32 = arith.constant 0 : i32
    %c0_i32_0 = arith.constant 0 : i32
    return %c0_i32 : i32
  }
  func.func @transform_7(%arg0: i32) -> (i32, i32) {
    %c0_i32 = arith.constant 0 : i32
    %c0_i32_0 = arith.constant 0 : i32
    return %c0_i32, %arg0 : i32, i32
  }
}

</mosaic_0001>

<llo_original>
// kernel: tpu_custom_call.1
$region0: #{tpu_custom_call.1}
  #allocation0 [shape = 'u32[]', space=smem, size = 0x4, offset = 0x4, fixed_abs, tag = 'smem constant byte address 0x4 - core index']
  #allocation1 [shape = 'u32[144,128]{1,0:T(1,128)}', space=vmem, size = 0x12000, scoped, tag = 'internal scratch']
  #allocation2 [shape = 'f32[1]{0:T(128)S(6)}', space=smem, size = 0x200, scoped, tag = 'scoped memory for tpu_custom_call.1']
  %s0 = inlined_call_operand.vmem [shape: f32[128,32], index: 0, kind: input, shape index: {}]
  %s1 = inlined_call_operand.vmem [shape: f32[64,32], index: 1, kind: input, shape index: {}]
  %s2 = inlined_call_operand.vmem [shape: f32[64,1], index: 2, kind: input, shape index: {}]
  %s3 = inlined_call_operand.vmem [shape: f32[64,64], index: 3, kind: input, shape index: {}]
  %s4 = inlined_call_operand.vmem [shape: f32[64,1], index: 4, kind: input, shape index: {}]
  %s5 = inlined_call_operand.vmem [shape: f32[64,1], index: 5, kind: input, shape index: {}]
  %s6 = inlined_call_operand.<no memory space> [shape: f32[1], index: 6, kind: input, shape index: {}]
  %s7 = inlined_call_operand.hbm [shape: f32[1,128], index: 7, kind: output, shape index: {}]
  %s8 = sld [smem:[#allocation0]]
  $region38: #{tpu_custom_call.1} parent=0
    _
  %s10 = ssub.s32 1, %s8
  %s11 = scalar_select 0, %s10, %s8
  %12 = sst [smem:[#allocation2]] %s6
  $region1: #{tpu_custom_call.1} parent=0
    #allocation3 [shape = 'u8[512]{0}', space=vmem, size = 0x400, scoped, tag = 'output window, operand 0, single buffered']
    #allocation4 [shape = 's32[1]{0}', space=sflag, size = 0x4, scoped, tag = 'scoped memory for tpu_custom_call.1']
    %13 = vsyncpa [#allocation4], 0
    // Predicated region
    $region2: #{tpu_custom_call.1} parent=1 // pred_check
      _
    $region3: #{tpu_custom_call.1} parent=1 // pred_check_branch
      %15 = sbr.rel (0) target = $region5
    $region4: #{tpu_custom_call.1} parent=1 // pred_region
      _
    $region5: #{tpu_custom_call.1} parent=1 // pred_fallthru
      _
    // Predicated region
    $region6: #{tpu_custom_call.1} parent=1 // pred_check
      _
    $region7: #{tpu_custom_call.1} parent=1 // pred_check_branch
      %17 = sbr.rel (0) target = $region9
    $region8: #{tpu_custom_call.1} parent=1 // pred_region
      _
    $region9: #{tpu_custom_call.1} parent=1 // pred_fallthru
      _
    // Predicated region
    $region10: #{tpu_custom_call.1} parent=1 // pred_check
      _
    $region11: #{tpu_custom_call.1} parent=1 // pred_check_branch
      %19 = sbr.rel (0) target = $region13
    $region12: #{tpu_custom_call.1} parent=1 // pred_region
      _
    $region13: #{tpu_custom_call.1} parent=1 // pred_fallthru
      _
    // Predicated region
    $region14: #{tpu_custom_call.1} parent=1 // pred_check
      _
    $region15: #{tpu_custom_call.1} parent=1 // pred_check_branch
      %21 = sbr.rel (0) target = $region17
    $region16: #{tpu_custom_call.1} parent=1 // pred_region
      _
    $region17: #{tpu_custom_call.1} parent=1 // pred_fallthru
      _
    // Predicated region
    $region18: #{tpu_custom_call.1} parent=1 // pred_check
      _
    $region19: #{tpu_custom_call.1} parent=1 // pred_check_branch
      %23 = sbr.rel (0) target = $region21
    $region20: #{tpu_custom_call.1} parent=1 // pred_region
      _
    $region21: #{tpu_custom_call.1} parent=1 // pred_fallthru
      _
    // Predicated region
    $region22: #{tpu_custom_call.1} parent=1 // pred_check
      _
    $region23: #{tpu_custom_call.1} parent=1 // pred_check_branch
      %25 = sbr.rel (0) target = $region25
    $region24: #{tpu_custom_call.1} parent=1 // pred_region
      _
    $region25: #{tpu_custom_call.1} parent=1 // pred_fallthru
      _
    // Predicated region
    $region26: #{tpu_custom_call.1} parent=1 // pred_check
      _
    $region27: #{tpu_custom_call.1} parent=1 // pred_check_branch
      %27 = sbr.rel (0) target = $region29
    $region28: #{tpu_custom_call.1} parent=1 // pred_region
      _
    $region29: #{tpu_custom_call.1} parent=1 // pred_fallthru
      _
    %v28 = vld [vmem:[%s1] sm:$0xff]
    %v29 = vld [vmem:[%s1 + $0x8] sm:$0xff]
    %v30 = vld [vmem:[%s1 + $0x10] sm:$0xff]
    %v31 = vld [vmem:[%s1 + $0x18] sm:$0xff]
    %v32 = vld [vmem:[%s1 + $0x20] sm:$0xff]
    %v33 = vld [vmem:[%s1 + $0x28] sm:$0xff]
    %v34 = vld [vmem:[%s1 + $0x30] sm:$0xff]
    %v35 = vld [vmem:[%s1 + $0x38] sm:$0xff]
    %v36 = vld [vmem:[%s0] sm:$0xff]
    %v37 = vld [vmem:[%s0 + $0x8] sm:$0xff]
    %v38 = vld [vmem:[%s0 + $0x10] sm:$0xff]
    %v39 = vld [vmem:[%s0 + $0x18] sm:$0xff]
    %v40 = vld [vmem:[%s0 + $0x20] sm:$0xff]
    %v41 = vld [vmem:[%s0 + $0x28] sm:$0xff]
    %v42 = vld [vmem:[%s0 + $0x30] sm:$0xff]
    %v43 = vld [vmem:[%s0 + $0x38] sm:$0xff]
    %v44 = vld [vmem:[%s0 + $0x40] sm:$0xff]
    %v45 = vld [vmem:[%s0 + $0x48] sm:$0xff]
    %v46 = vld [vmem:[%s0 + $0x50] sm:$0xff]
    %v47 = vld [vmem:[%s0 + $0x58] sm:$0xff]
    %v48 = vld [vmem:[%s0 + $0x60] sm:$0xff]
    %v49 = vld [vmem:[%s0 + $0x68] sm:$0xff]
    %v50 = vld [vmem:[%s0 + $0x70] sm:$0xff]
    %v51 = vld [vmem:[%s0 + $0x78] sm:$0xff]
    %v52 = vld [vmem:[%s2] sm:$0xff]
    %v53 = vld [vmem:[%s2 + $0x8] sm:$0xff]
    %v54 = vld [vmem:[%s2 + $0x10] sm:$0xff]
    %v55 = vld [vmem:[%s2 + $0x18] sm:$0xff]
    %v56 = vld [vmem:[%s2 + $0x20] sm:$0xff]
    %v57 = vld [vmem:[%s2 + $0x28] sm:$0xff]
    %v58 = vld [vmem:[%s2 + $0x30] sm:$0xff]
    %v59 = vld [vmem:[%s2 + $0x38] sm:$0xff]
    %61 = vset.pattern.permute.xlu0 0
    %62 = vperm.xlu0 %61, %v52
    %v63 = vpop.permute.xlu0 %62
    %66 = vset.pattern.permute.xlu0 0
    %67 = vperm.xlu0 %66, %v53
    %v68 = vpop.permute.xlu0 %67
    %71 = vset.pattern.permute.xlu0 0
    %72 = vperm.xlu0 %71, %v54
    %v73 = vpop.permute.xlu0 %72
    %76 = vset.pattern.permute.xlu0 0
    %77 = vperm.xlu0 %76, %v55
    %v78 = vpop.permute.xlu0 %77
    %81 = vset.pattern.permute.xlu0 0
    %82 = vperm.xlu0 %81, %v56
    %v83 = vpop.permute.xlu0 %82
    %86 = vset.pattern.permute.xlu0 0
    %87 = vperm.xlu0 %86, %v57
    %v88 = vpop.permute.xlu0 %87
    %91 = vset.pattern.permute.xlu0 0
    %92 = vperm.xlu0 %91, %v58
    %v93 = vpop.permute.xlu0 %92
    %96 = vset.pattern.permute.xlu0 0
    %97 = vperm.xlu0 %96, %v59
    %v98 = vpop.permute.xlu0 %97
    %vm100 = vcmask 261120
    %v102 = vsel %vm100, %v28, 0
    %v105 = vsel %vm100, %v29, 0
    %v108 = vsel %vm100, %v30, 0
    %v111 = vsel %vm100, %v31, 0
    %v114 = vsel %vm100, %v32, 0
    %v117 = vsel %vm100, %v33, 0
    %v120 = vsel %vm100, %v34, 0
    %v123 = vsel %vm100, %v35, 0
    %v126 = vsel %vm100, %v36, 0
    %v129 = vsel %vm100, %v37, 0
    %v132 = vsel %vm100, %v38, 0
    %v135 = vsel %vm100, %v39, 0
    %v138 = vsel %vm100, %v40, 0
    %v141 = vsel %vm100, %v41, 0
    %v144 = vsel %vm100, %v42, 0
    %v147 = vsel %vm100, %v43, 0
    %v150 = vsel %vm100, %v44, 0
    %v153 = vsel %vm100, %v45, 0
    %v156 = vsel %vm100, %v46, 0
    %v159 = vsel %vm100, %v47, 0
    %v162 = vsel %vm100, %v48, 0
    %v165 = vsel %vm100, %v49, 0
    %v168 = vsel %vm100, %v50, 0
    %v171 = vsel %vm100, %v51, 0
    %173 = vmatprep.subr.mxu0 0.0
    %174 = vmatpush1.xpose.msra.mxu0 %v171
    %175 = vmatprep.subr.mxu0 0.0
    %176 = vmatpush1.xpose.msra.mxu0 %v168
    %177 = vmatprep.subr.mxu0 0.0
    %178 = vmatpush1.xpose.msra.mxu0 %v165
    %179 = vmatprep.subr.mxu0 0.0
    %180 = vmatpush1.xpose.msra.mxu0 %v162
    %181 = vmatprep.subr.mxu0 0.0
    %182 = vmatpush1.xpose.msra.mxu0 %v159
    %183 = vmatprep.subr.mxu0 0.0
    %184 = vmatpush1.xpose.msra.mxu0 %v156
    %185 = vmatprep.subr.mxu0 0.0
    %186 = vmatpush1.xpose.msra.mxu0 %v153
    %187 = vmatprep.subr.mxu0 0.0
    %188 = vmatpush1.xpose.msra.mxu0 %v150
    %189 = vmatprep.subr.mxu0 0.0
    %190 = vmatpush1.xpose.msra.mxu0 %v147
    %191 = vmatprep.subr.mxu0 0.0
    %192 = vmatpush1.xpose.msra.mxu0 %v144
    %193 = vmatprep.subr.mxu0 0.0
    %194 = vmatpush1.xpose.msra.mxu0 %v141
    %195 = vmatprep.subr.mxu0 0.0
    %196 = vmatpush1.xpose.msra.mxu0 %v138
    %197 = vmatprep.subr.mxu0 0.0
    %198 = vmatpush1.xpose.msra.mxu0 %v135
    %199 = vmatprep.subr.mxu0 0.0
    %200 = vmatpush1.xpose.msra.mxu0 %v132
    %201 = vmatprep.subr.mxu0 0.0
    %202 = vmatpush1.xpose.msra.mxu0 %v129
    %203 = vmatprep.subr.mxu0 0.0
    %204 = vmatpush1.xpose.msra.mxu0 %v126
    %205 = vmatprep.subr.mxu0 0.0
    %206 = vmatpush2.xpose.msra.mxu0 0.0
    %207 = vmatprep.subr.mxu0 0.0
    %208 = vmatpush2.xpose.msra.mxu0 0.0
    %209 = vmatprep.subr.mxu0 0.0
    %210 = vmatpush2.xpose.msra.mxu0 0.0
    %211 = vmatprep.subr.mxu0 0.0
    %212 = vmatpush2.xpose.msra.mxu0 0.0
    %213 = vmatprep.subr.mxu0 0.0
    %214 = vmatpush2.xpose.msra.mxu0 0.0
    %215 = vmatprep.subr.mxu0 0.0
    %216 = vmatpush2.xpose.msra.mxu0 0.0
    %217 = vmatprep.subr.mxu0 0.0
    %218 = vmatpush2.xpose.msra.mxu0 0.0
    %219 = vmatprep.subr.mxu0 0.0
    %220 = vmatpush2.xpose.msra.mxu0 0.0
    %221 = vmatprep.subr.mxu0 0.0
    %222 = vmatpush2.xpose.msra.mxu0 0.0
    %223 = vmatprep.subr.mxu0 0.0
    %224 = vmatpush2.xpose.msra.mxu0 0.0
    %225 = vmatprep.subr.mxu0 0.0
    %226 = vmatpush2.xpose.msra.mxu0 0.0
    %227 = vmatprep.subr.mxu0 0.0
    %228 = vmatpush2.xpose.msra.mxu0 0.0
    %229 = vmatprep.subr.mxu0 0.0
    %230 = vmatpush2.xpose.msra.mxu0 0.0
    %231 = vmatprep.subr.mxu0 0.0
    %232 = vmatpush2.xpose.msra.mxu0 0.0
    %233 = vmatprep.subr.mxu0 0.0
    %234 = vmatpush2.xpose.msra.mxu0 0.0
    %235 = vmatprep.subr.mxu0 0.0
    %236 = vmatpush2.xpose.msra.mxu0 0.0
    %237 = vmatprep.mubr.f32.mxu0 0.0
    %238 = vmatmul.mubr.f32.gmra.mxu0 %v102
    %v239 = vpop.f32.mrf.mxu0
    %v240 = vadd.f32 %v63, %v239
    %v241 = vpop.f32.mrf.mxu0
    %242 = vmatprep.mubr.f32.mxu0 0.0
    %243 = vmatmul.mubr.f32.gmra.mxu0 %v105
    %v244 = vpop.f32.mrf.mxu0
    %v245 = vadd.f32 %v68, %v244
    %v246 = vpop.f32.mrf.mxu0
    %247 = vmatprep.mubr.f32.mxu0 0.0
    %248 = vmatmul.mubr.f32.gmra.mxu0 %v108
    %v249 = vpop.f32.mrf.mxu0
    %v250 = vadd.f32 %v73, %v249
    %v251 = vpop.f32.mrf.mxu0
    %252 = vmatprep.mubr.f32.mxu0 0.0
    %253 = vmatmul.mubr.f32.gmra.mxu0 %v111
    %v254 = vpop.f32.mrf.mxu0
    %v255 = vadd.f32 %v78, %v254
    %v256 = vpop.f32.mrf.mxu0
    %257 = vmatprep.mubr.f32.mxu0 0.0
    %258 = vmatmul.mubr.f32.gmra.mxu0 %v114
    %v259 = vpop.f32.mrf.mxu0
    %v260 = vadd.f32 %v83, %v259
    %v261 = vpop.f32.mrf.mxu0
    %262 = vmatprep.mubr.f32.mxu0 0.0
    %263 = vmatmul.mubr.f32.gmra.mxu0 %v117
    %v264 = vpop.f32.mrf.mxu0
    %v265 = vadd.f32 %v88, %v264
    %v266 = vpop.f32.mrf.mxu0
    %267 = vmatprep.mubr.f32.mxu0 0.0
    %268 = vmatmul.mubr.f32.gmra.mxu0 %v120
    %v269 = vpop.f32.mrf.mxu0
    %v270 = vadd.f32 %v93, %v269
    %v271 = vpop.f32.mrf.mxu0
    %272 = vmatprep.mubr.f32.mxu0 0.0
    %273 = vmatmul.mubr.f32.gmra.mxu0 %v123
    %v274 = vpop.f32.mrf.mxu0
    %v275 = vadd.f32 %v98, %v274
    %v276 = vpop.f32.mrf.mxu0
    %277 = vdwg.mxu0
    %v278 = vmax.f32 %v240, 0.0
    %v279 = vmax.f32 %v245, 0.0
    %v280 = vmax.f32 %v250, 0.0
    %v281 = vmax.f32 %v255, 0.0
    %v282 = vmax.f32 %v260, 0.0
    %v283 = vmax.f32 %v265, 0.0
    %v284 = vmax.f32 %v270, 0.0
    %v285 = vmax.f32 %v275, 0.0
    %v286 = vld [vmem:[%s3] sm:$0xff]
    %v287 = vld [vmem:[%s3 + $0x8] sm:$0xff]
    %v288 = vld [vmem:[%s3 + $0x10] sm:$0xff]
    %v289 = vld [vmem:[%s3 + $0x18] sm:$0xff]
    %v290 = vld [vmem:[%s3 + $0x20] sm:$0xff]
    %v291 = vld [vmem:[%s3 + $0x28] sm:$0xff]
    %v292 = vld [vmem:[%s3 + $0x30] sm:$0xff]
    %v293 = vld [vmem:[%s3 + $0x38] sm:$0xff]
    %v294 = vld [vmem:[%s4] sm:$0xff]
    %v295 = vld [vmem:[%s4 + $0x8] sm:$0xff]
    %v296 = vld [vmem:[%s4 + $0x10] sm:$0xff]
    %v297 = vld [vmem:[%s4 + $0x18] sm:$0xff]
    %v298 = vld [vmem:[%s4 + $0x20] sm:$0xff]
    %v299 = vld [vmem:[%s4 + $0x28] sm:$0xff]
    %v300 = vld [vmem:[%s4 + $0x30] sm:$0xff]
    %v301 = vld [vmem:[%s4 + $0x38] sm:$0xff]
    %303 = vset.pattern.permute.xlu0 0
    %304 = vperm.xlu0 %303, %v294
    %v305 = vpop.permute.xlu0 %304
    %308 = vset.pattern.permute.xlu0 0
    %309 = vperm.xlu0 %308, %v295
    %v310 = vpop.permute.xlu0 %309
    %313 = vset.pattern.permute.xlu0 0
    %314 = vperm.xlu0 %313, %v296
    %v315 = vpop.permute.xlu0 %314
    %318 = vset.pattern.permute.xlu0 0
    %319 = vperm.xlu0 %318, %v297
    %v320 = vpop.permute.xlu0 %319
    %323 = vset.pattern.permute.xlu0 0
    %324 = vperm.xlu0 %323, %v298
    %v325 = vpop.permute.xlu0 %324
    %328 = vset.pattern.permute.xlu0 0
    %329 = vperm.xlu0 %328, %v299
    %v330 = vpop.permute.xlu0 %329
    %333 = vset.pattern.permute.xlu0 0
    %334 = vperm.xlu0 %333, %v300
    %v335 = vpop.permute.xlu0 %334
    %338 = vset.pattern.permute.xlu0 0
    %339 = vperm.xlu0 %338, %v301
    %v340 = vpop.permute.xlu0 %339
    %vm342 = vcmask 523264
    %v344 = vsel %vm342, %v286, 0
    %v347 = vsel %vm342, %v287, 0
    %v350 = vsel %vm342, %v288, 0
    %v353 = vsel %vm342, %v289, 0
    %v356 = vsel %vm342, %v290, 0
    %v359 = vsel %vm342, %v291, 0
    %v362 = vsel %vm342, %v292, 0
    %v365 = vsel %vm342, %v293, 0
    %367 = vmatprep.subr.mxu0 0.0
    %368 = vmatpush1.msra.mxu0 0.0
    %369 = vmatprep.subr.mxu0 0.0
    %370 = vmatpush1.msra.mxu0 0.0
    %371 = vmatprep.subr.mxu0 0.0
    %372 = vmatpush1.msra.mxu0 0.0
    %373 = vmatprep.subr.mxu0 0.0
    %374 = vmatpush1.msra.mxu0 0.0
    %375 = vmatprep.subr.mxu0 0.0
    %376 = vmatpush1.msra.mxu0 0.0
    %377 = vmatprep.subr.mxu0 0.0
    %378 = vmatpush1.msra.mxu0 0.0
    %379 = vmatprep.subr.mxu0 0.0
    %380 = vmatpush1.msra.mxu0 0.0
    %381 = vmatprep.subr.mxu0 0.0
    %382 = vmatpush1.msra.mxu0 0.0
    %383 = vmatprep.subr.mxu0 0.0
    %384 = vmatpush1.msra.mxu0 %v285
    %385 = vmatprep.subr.mxu0 0.0
    %386 = vmatpush1.msra.mxu0 %v284
    %387 = vmatprep.subr.mxu0 0.0
    %388 = vmatpush1.msra.mxu0 %v283
    %389 = vmatprep.subr.mxu0 0.0
    %390 = vmatpush1.msra.mxu0 %v282
    %391 = vmatprep.subr.mxu0 0.0
    %392 = vmatpush1.msra.mxu0 %v281
    %393 = vmatprep.subr.mxu0 0.0
    %394 = vmatpush1.msra.mxu0 %v280
    %395 = vmatprep.subr.mxu0 0.0
    %396 = vmatpush1.msra.mxu0 %v279
    %397 = vmatprep.subr.mxu0 0.0
    %398 = vmatpush1.msra.mxu0 %v278
    %399 = vmatprep.subr.mxu0 0.0
    %400 = vmatpush2.msra.mxu0 0.0
    %401 = vmatprep.subr.mxu0 0.0
    %402 = vmatpush2.msra.mxu0 0.0
    %403 = vmatprep.subr.mxu0 0.0
    %404 = vmatpush2.msra.mxu0 0.0
    %405 = vmatprep.subr.mxu0 0.0
    %406 = vmatpush2.msra.mxu0 0.0
    %407 = vmatprep.subr.mxu0 0.0
    %408 = vmatpush2.msra.mxu0 0.0
    %409 = vmatprep.subr.mxu0 0.0
    %410 = vmatpush2.msra.mxu0 0.0
    %411 = vmatprep.subr.mxu0 0.0
    %412 = vmatpush2.msra.mxu0 0.0
    %413 = vmatprep.subr.mxu0 0.0
    %414 = vmatpush2.msra.mxu0 0.0
    %415 = vmatprep.subr.mxu0 0.0
    %416 = vmatpush2.msra.mxu0 0.0
    %417 = vmatprep.subr.mxu0 0.0
    %418 = vmatpush2.msra.mxu0 0.0
    %419 = vmatprep.subr.mxu0 0.0
    %420 = vmatpush2.msra.mxu0 0.0
    %421 = vmatprep.subr.mxu0 0.0
    %422 = vmatpush2.msra.mxu0 0.0
    %423 = vmatprep.subr.mxu0 0.0
    %424 = vmatpush2.msra.mxu0 0.0
    %425 = vmatprep.subr.mxu0 0.0
    %426 = vmatpush2.msra.mxu0 0.0
    %427 = vmatprep.subr.mxu0 0.0
    %428 = vmatpush2.msra.mxu0 0.0
    %429 = vmatprep.subr.mxu0 0.0
    %430 = vmatpush2.msra.mxu0 0.0
    %431 = vmatprep.mubr.f32.mxu0 0.0
    %432 = vmatmul.mubr.f32.gmra.mxu0 %v344
    %v433 = vpop.f32.mrf.mxu0
    %v434 = vadd.f32 %v305, %v433
    %v435 = vpop.f32.mrf.mxu0
    %436 = vmatprep.mubr.f32.mxu0 0.0
    %437 = vmatmul.mubr.f32.gmra.mxu0 %v347
    %v438 = vpop.f32.mrf.mxu0
    %v439 = vadd.f32 %v310, %v438
    %v440 = vpop.f32.mrf.mxu0
    %441 = vmatprep.mubr.f32.mxu0 0.0
    %442 = vmatmul.mubr.f32.gmra.mxu0 %v350
    %v443 = vpop.f32.mrf.mxu0
    %v444 = vadd.f32 %v315, %v443
    %v445 = vpop.f32.mrf.mxu0
    %446 = vmatprep.mubr.f32.mxu0 0.0
    %447 = vmatmul.mubr.f32.gmra.mxu0 %v353
    %v448 = vpop.f32.mrf.mxu0
    %v449 = vadd.f32 %v320, %v448
    %v450 = vpop.f32.mrf.mxu0
    %451 = vmatprep.mubr.f32.mxu0 0.0
    %452 = vmatmul.mubr.f32.gmra.mxu0 %v356
    %v453 = vpop.f32.mrf.mxu0
    %v454 = vadd.f32 %v325, %v453
    %v455 = vpop.f32.mrf.mxu0
    %456 = vmatprep.mubr.f32.mxu0 0.0
    %457 = vmatmul.mubr.f32.gmra.mxu0 %v359
    %v458 = vpop.f32.mrf.mxu0
    %v459 = vadd.f32 %v330, %v458
    %v460 = vpop.f32.mrf.mxu0
    %461 = vmatprep.mubr.f32.mxu0 0.0
    %462 = vmatmul.mubr.f32.gmra.mxu0 %v362
    %v463 = vpop.f32.mrf.mxu0
    %v464 = vadd.f32 %v335, %v463
    %v465 = vpop.f32.mrf.mxu0
    %466 = vmatprep.mubr.f32.mxu0 0.0
    %467 = vmatmul.mubr.f32.gmra.mxu0 %v365
    %v468 = vpop.f32.mrf.mxu0
    %v469 = vadd.f32 %v340, %v468
    %v470 = vpop.f32.mrf.mxu0
    %471 = vdwg.mxu0
    %v472 = vmax.f32 %v434, 0.0
    %v473 = vmax.f32 %v439, 0.0
    %v474 = vmax.f32 %v444, 0.0
    %v475 = vmax.f32 %v449, 0.0
    %v476 = vmax.f32 %v454, 0.0
    %v477 = vmax.f32 %v459, 0.0
    %v478 = vmax.f32 %v464, 0.0
    %v479 = vmax.f32 %v469, 0.0
    %v480 = vld [vmem:[%s5] sm:$0xff]
    %v481 = vld [vmem:[%s5 + $0x8] sm:$0xff]
    %v482 = vld [vmem:[%s5 + $0x10] sm:$0xff]
    %v483 = vld [vmem:[%s5 + $0x18] sm:$0xff]
    %v484 = vld [vmem:[%s5 + $0x20] sm:$0xff]
    %v485 = vld [vmem:[%s5 + $0x28] sm:$0xff]
    %v486 = vld [vmem:[%s5 + $0x30] sm:$0xff]
    %v487 = vld [vmem:[%s5 + $0x38] sm:$0xff]
    %489 = vset.pattern.permute.xlu0 0
    %490 = vperm.xlu0 %489, %v480
    %v491 = vpop.permute.xlu0 %490
    %494 = vset.pattern.permute.xlu0 0
    %495 = vperm.xlu0 %494, %v481
    %v496 = vpop.permute.xlu0 %495
    %499 = vset.pattern.permute.xlu0 0
    %500 = vperm.xlu0 %499, %v482
    %v501 = vpop.permute.xlu0 %500
    %504 = vset.pattern.permute.xlu0 0
    %505 = vperm.xlu0 %504, %v483
    %v506 = vpop.permute.xlu0 %505
    %509 = vset.pattern.permute.xlu0 0
    %510 = vperm.xlu0 %509, %v484
    %v511 = vpop.permute.xlu0 %510
    %514 = vset.pattern.permute.xlu0 0
    %515 = vperm.xlu0 %514, %v485
    %v516 = vpop.permute.xlu0 %515
    %519 = vset.pattern.permute.xlu0 0
    %520 = vperm.xlu0 %519, %v486
    %v521 = vpop.permute.xlu0 %520
    %524 = vset.pattern.permute.xlu0 0
    %525 = vperm.xlu0 %524, %v487
    %v526 = vpop.permute.xlu0 %525
    %v528 = vmul.f32 %v472, %v491
    %v529 = vmul.f32 %v473, %v496
    %v530 = vmul.f32 %v474, %v501
    %v531 = vmul.f32 %v475, %v506
    %v532 = vmul.f32 %v476, %v511
    %v533 = vmul.f32 %v477, %v516
    %v534 = vmul.f32 %v478, %v521
    %v535 = vmul.f32 %v479, %v526
    %v536 = vadd.f32 %v528, %v529
    %v537 = vadd.f32 %v536, %v530
    %v538 = vadd.f32 %v537, %v531
    %v539 = vadd.f32 %v538, %v532
    %v540 = vadd.f32 %v539, %v533
    %v541 = vadd.f32 %v540, %v534
    %v542 = vadd.f32 %v541, %v535
    %v543 = vrot.slane %v542, 4
    %v544 = vadd.f32 %v542, %v543
    %v545 = vrot.slane %v544, 2
    %v546 = vadd.f32 %v544, %v545
    %v547 = vrot.slane %v546, 1
    %v548 = vadd.f32 %v546, %v547
    %s549 = sld [smem:[#allocation2]]
    %v550 = vstv %s549
    %v551 = vadd.f32 %v548, %v550
    %552 = vst [vmem:[#allocation3] sm:$0x1] %v551
    // Predicated region
    $region30: #{tpu_custom_call.1} parent=1 // pred_check
      _
    $region31: #{tpu_custom_call.1} parent=1 // pred_check_branch
      %554 = sbr.rel (0) target = $region33
    $region32: #{tpu_custom_call.1} parent=1 // pred_region
      %s556 = ssub.s32 16, 16
      %557 = vsyncadd [#allocation4], %s556
      %s559 = sshll.u32 [#allocation3], 4
      %s560 = int_to_ptr.vmem [resolvable:$true] %s559
      %562 = dma.vmem_to_hbm [thread:$0]  %s560, 16, %s7, [#allocation4]
    $region33: #{tpu_custom_call.1} parent=1 // pred_fallthru
      _
    // Predicated region
    $region34: #{tpu_custom_call.1} parent=1 // pred_check
      _
    $region35: #{tpu_custom_call.1} parent=1 // pred_check_branch
      %564 = sbr.rel (0) target = $region37
    $region36: #{tpu_custom_call.1} parent=1 // pred_region
      %565 = dma.done [#allocation4], 16
    $region37: #{tpu_custom_call.1} parent=1 // pred_fallthru
      _
    %566 = vsyncpa [#allocation4], 1

</llo_original>
